<compile_context>
chip_gen: v7x
topology: tpu7x:2x2x1
jax: 0.10.0
libtpu: 0.0.40
codegen_flags: <defaults>
</compile_context>

<pallas_src>
import functools

import jax
import jax.numpy as jnp
from jax.experimental import pallas as pl
from jax.experimental.pallas import tpu as pltpu


def _label_smoothing_kernel(pred_ref, tgt_ref, out_ref, *, confidence, off_value,
                            n_valid_rows, block_rows):
    i = pl.program_id(0)

    # Single scalar accumulator, resident across the (sequential) batch grid.
    @pl.when(i == 0)
    def _():
        out_ref[...] = jnp.zeros_like(out_ref)

    x = pred_ref[...].astype(jnp.float32)                       # (TB, C) f32 upcast in VMEM
    TB, C = x.shape

    # Numerically stable per-row log-sum-exp (exp/log go to the EUP slot).
    m = jnp.max(x, axis=-1, keepdims=True)                      # (TB, 1)
    lse = jnp.log(jnp.sum(jnp.exp(x - m), axis=-1, keepdims=True)) + m

    # sum_c(true_dist_c) == 1 exactly, so
    #   per_row = lse - sum_c(w_c * x_c),  w_c = conf if c == target else off.
    col = jax.lax.broadcasted_iota(jnp.int32, (TB, C), 1)
    tgt = tgt_ref[...]                                          # (TB, 1) int32
    w = jnp.where(col == tgt, jnp.float32(confidence), jnp.float32(off_value))
    wsum = jnp.sum(w * x, axis=-1, keepdims=True)               # (TB, 1)

    per_row = lse - wsum                                        # (TB, 1)

    # Mask rows past the real batch size (ragged last block holds undefined
    # data; the select stops any NaN/Inf in those rows from propagating).
    row = jax.lax.broadcasted_iota(jnp.int32, (TB, 1), 0) + i * block_rows
    per_row = jnp.where(row < n_valid_rows, per_row, 0.0)

    out_ref[...] += jnp.sum(per_row)


def _round_up(n, m):
    return (n + m - 1) // m * m


def label_smoothing_loss(pred, target, *, classes, smoothing=0.0):
    """JAX/Pallas equivalent of LabelSmoothingLossV2.forward (mean reduction)."""
    assert pred.ndim == 2 and pred.shape[-1] == classes
    assert classes > 1, "label smoothing requires classes > 1 (divides by classes - 1)"

    B, C = pred.shape
    confidence = 1.0 - smoothing
    off_value = smoothing / (classes - 1)

    # Dtype-aware batch tile: 2x double-buffered native input + ~3 f32 full-tile
    # temporaries within ~20 MiB (fits v7x's 64 MiB physical VMEM per core).
    itemsize = jnp.dtype(pred.dtype).itemsize
    bytes_per_row = C * (2 * itemsize + 3 * 4)
    budget_bytes = 20 * 1024 * 1024
    tb_cap = max(8, (budget_bytes // bytes_per_row) // 8 * 8)
    TB = int(min(4096, tb_cap, _round_up(B, 8)))

    n_tiles = (B + TB - 1) // TB                                 # ragged last block, no pad
    tgt2d = target.astype(jnp.int32).reshape(B, 1)

    kernel = functools.partial(
        _label_smoothing_kernel,
        confidence=float(confidence),
        off_value=float(off_value),
        n_valid_rows=B,
        block_rows=TB,
    )

    total = pl.pallas_call(
        kernel,
        out_shape=jax.ShapeDtypeStruct((1, 1), jnp.float32),
        grid=(n_tiles,),
        in_specs=[
            pl.BlockSpec((TB, C), lambda i: (i, 0)),             # pred tile (native dtype)
            pl.BlockSpec((TB, 1), lambda i: (i, 0)),             # target tile
        ],
        out_specs=pl.BlockSpec((1, 1), lambda i: (0, 0)),        # resident scalar accumulator
        compiler_params=pltpu.CompilerParams(
            dimension_semantics=("arbitrary",),                  # output accumulates across tiles
            vmem_limit_bytes=40 * 1024 * 1024,
        ),
        cost_estimate=pl.CostEstimate(
            flops=int(9 * B * C),
            transcendentals=int(B * C),
            bytes_accessed=int(B * C * itemsize + B * 4 + 4),
        ),
    )(pred, tgt2d)

    # Only a scalar divide remains outside the kernel.
    return total[0, 0] / jnp.float32(B)


def _reference_loss(pred, target, *, classes, smoothing=0.0):
    confidence = 1.0 - smoothing
    logp = jax.nn.log_softmax(pred.astype(jnp.float32), axis=-1)
    off = smoothing / (classes - 1)
    true_dist = jnp.full_like(logp, off)
    true_dist = true_dist.at[jnp.arange(pred.shape[0]), target].set(confidence)
    return jnp.mean(jnp.sum(-true_dist * logp, axis=-1))


if __name__ == "__main__":
    smoothing = 0.1
    key = jax.random.PRNGKey(0)

    # Aligned, ragged (exercises the cdiv last-block row mask), and bf16 input.
    cases = [((8, 32), jnp.float32), ((13, 160), jnp.float32), ((24, 256), jnp.bfloat16)]
    for (B, C), dt in cases:
        key, kp, kt = jax.random.split(key, 3)
        pred = jax.random.normal(kp, (B, C), dtype=jnp.float32).astype(dt)
        target = jax.random.randint(kt, (B,), 0, C, dtype=jnp.int32)

        loss = label_smoothing_loss(pred, target, classes=C, smoothing=smoothing)
        loss = jax.block_until_ready(loss)

        ref = _reference_loss(pred, target, classes=C, smoothing=smoothing)
        assert jnp.allclose(loss, ref, atol=1e-3, rtol=1e-4), ((B, C, str(dt)), loss, ref)

    print("KERNEL_OK")
</pallas_src>

<mosaic_0001>
module attributes {stable_mosaic.version = 11 : i64} {
  func.func @_label_smoothing_kernel(%arg0: i32, %arg1: memref<8x32xf32, #tpu.memory_space<vmem>>, %arg2: memref<8x1xi32, #tpu.memory_space<vmem>>, %arg3: memref<1x1xf32, #tpu.memory_space<vmem>>) attributes {dimension_semantics = [#tpu.dimension_semantics<arbitrary>], iteration_bounds = array<i64: 1>, scalar_prefetch = 0 : i64, scratch_operands = 0 : i64, tpu.core_type = #tpu.core_type<tc>, window_params = [{transform_indices = @transform_0, window_bounds = array<i64: 8, 32>}, {transform_indices = @transform_1, window_bounds = array<i64: 8, 1>}, {pipeline_mode = #tpu.pipeline_mode<synchronous>, transform_indices = @transform_2, window_bounds = array<i64: 1, 1>}]} {
    %c0_i32 = arith.constant 0 : i32
    %0 = arith.cmpi eq, %arg0, %c0_i32 : i32
    %1 = arith.extui %0 : i1 to i32
    %c0_i32_0 = arith.constant 0 : i32
    %2 = arith.cmpi ne, %1, %c0_i32_0 : i32
    scf.if %2 {
      %cst_15 = arith.constant 0.000000e+00 : f32
      %40 = vector.broadcast %cst_15 : f32 to vector<1x1xf32>
      %c0_16 = arith.constant 0 : index
      %c0_17 = arith.constant 0 : index
      %41 = vector.load %arg3[%c0_16, %c0_17] : memref<1x1xf32, #tpu.memory_space<vmem>>, vector<1x1xf32>
      tpu.vector_store %arg3[%c0_16, %c0_17], %40 {strides = array<i32>} : memref<1x1xf32, #tpu.memory_space<vmem>>, vector<1x1xf32>,
    } else {
    }
    %c0 = arith.constant 0 : index
    %c0_1 = arith.constant 0 : index
    %3 = vector.load %arg1[%c0, %c0_1] : memref<8x32xf32, #tpu.memory_space<vmem>>, vector<8x32xf32>
    %cst = arith.constant dense<0xFF800000> : vector<8xf32>
    %4 = vector.multi_reduction <maximumf>, %3, %cst [1] : vector<8x32xf32> to vector<8xf32>
    %5 = vector.shape_cast %4 : vector<8xf32> to vector<8x1xf32>
    %6 = vector.broadcast %5 : vector<8x1xf32> to vector<8x32xf32>
    %7 = arith.subf %3, %6 : vector<8x32xf32>
    %8 = math.exp %7 : vector<8x32xf32>
    %cst_2 = arith.constant dense<0.000000e+00> : vector<8xf32>
    %9 = vector.multi_reduction <add>, %8, %cst_2 [1] : vector<8x32xf32> to vector<8xf32>
    %10 = vector.shape_cast %9 : vector<8xf32> to vector<8x1xf32>
    %11 = math.log %10 : vector<8x1xf32>
    %12 = arith.addf %11, %5 : vector<8x1xf32>
    %13 = tpu.iota {dimensions = array<i32: 1>} : vector<8x32xi32>
    %c0_3 = arith.constant 0 : index
    %c0_4 = arith.constant 0 : index
    %14 = vector.load %arg2[%c0_3, %c0_4] : memref<8x1xi32, #tpu.memory_space<vmem>>, vector<8x1xi32>
    %15 = vector.broadcast %14 : vector<8x1xi32> to vector<8x32xi32>
    %16 = arith.cmpi eq, %13, %15 : vector<8x32xi32>
    %cst_5 = arith.constant 0.899999976 : f32
    %cst_6 = arith.constant 0.0032258064 : f32
    %17 = vector.broadcast %cst_5 : f32 to vector<8x32xf32>
    %18 = vector.broadcast %cst_6 : f32 to vector<8x32xf32>
    %19 = arith.select %16, %17, %18 : vector<8x32xi1>, vector<8x32xf32>
    %20 = arith.mulf %19, %3 : vector<8x32xf32>
    %cst_7 = arith.constant dense<0.000000e+00> : vector<8xf32>
    %21 = vector.multi_reduction <add>, %20, %cst_7 [1] : vector<8x32xf32> to vector<8xf32>
    %22 = vector.shape_cast %21 : vector<8xf32> to vector<8x1xf32>
    %23 = arith.subf %12, %22 : vector<8x1xf32>
    %24 = tpu.iota {dimensions = array<i32: 0>} : vector<8x1xi32>
    %c8_i32 = arith.constant 8 : i32
    %25 = arith.muli %arg0, %c8_i32 : i32
    %26 = vector.broadcast %25 : i32 to vector<8x1xi32>
    %27 = arith.addi %24, %26 : vector<8x1xi32>
    %c8_i32_8 = arith.constant 8 : i32
    %28 = vector.broadcast %c8_i32_8 : i32 to vector<8x1xi32>
    %29 = arith.cmpi slt, %27, %28 : vector<8x1xi32>
    %cst_9 = arith.constant 0.000000e+00 : f32
    %30 = vector.broadcast %cst_9 : f32 to vector<8x1xf32>
    %31 = arith.select %29, %23, %30 : vector<8x1xi1>, vector<8x1xf32>
    %c0_10 = arith.constant 0 : index
    %c0_11 = arith.constant 0 : index
    %32 = vector.load %arg3[%c0_10, %c0_11] : memref<1x1xf32, #tpu.memory_space<vmem>>, vector<1x1xf32>
    %33 = vector.shape_cast %31 : vector<8x1xf32> to vector<1x8x1xf32>
    %cst_12 = arith.constant dense<0.000000e+00> : vector<1xf32>
    %34 = vector.multi_reduction <add>, %33, %cst_12 [1, 2] : vector<1x8x1xf32> to vector<1xf32>
    %35 = vector.shape_cast %34 : vector<1xf32> to vector<1x1x1xf32>
    %36 = vector.extract %35[0, 0, 0] : f32 from vector<1x1x1xf32>
    %37 = vector.broadcast %36 : f32 to vector<1x1xf32>
    %38 = arith.addf %32, %37 : vector<1x1xf32>
    %c0_13 = arith.constant 0 : index
    %c0_14 = arith.constant 0 : index
    %39 = vector.load %arg3[%c0_13, %c0_14] : memref<1x1xf32, #tpu.memory_space<vmem>>, vector<1x1xf32>
    tpu.vector_store %arg3[%c0_13, %c0_14], %38 {strides = array<i32>} : memref<1x1xf32, #tpu.memory_space<vmem>>, vector<1x1xf32>,
    return
  }
  func.func @transform_0(%arg0: i32) -> (i32, i32) {
    %c0_i32 = arith.constant 0 : i32
    %c0_i32_0 = arith.constant 0 : i32
    return %arg0, %c0_i32 : i32, i32
  }
  func.func @transform_1(%arg0: i32) -> (i32, i32) {
    %c0_i32 = arith.constant 0 : i32
    %c0_i32_0 = arith.constant 0 : i32
    return %arg0, %c0_i32 : i32, i32
  }
  func.func @transform_2(%arg0: i32) -> (i32, i32) {
    %c0_i32 = arith.constant 0 : i32
    %c0_i32_0 = arith.constant 0 : i32
    %c0_i32_1 = arith.constant 0 : i32
    return %c0_i32, %c0_i32_0 : i32, i32
  }
}

</mosaic_0001>

<llo_original>
// kernel: tpu_custom_call.1
$region0: #{tpu_custom_call.1}
  #allocation0 [shape = 'u32[]', space=smem, size = 0x4, offset = 0x4, fixed_abs, tag = 'smem constant byte address 0x4 - core index']
  #allocation1 [shape = 'u32[144,128]{1,0:T(1,128)}', space=vmem, size = 0x12000, scoped, tag = 'internal scratch']
  %s0 = inlined_call_operand.vmem [shape: f32[8,32], index: 0, kind: input, shape index: {}]
  %s1 = inlined_call_operand.vmem [shape: s32[8,1], index: 1, kind: input, shape index: {}]
  %s2 = inlined_call_operand.hbm [shape: f32[1,1], index: 2, kind: output, shape index: {}]
  %s3 = sld [smem:[#allocation0]]
  $region22: #{tpu_custom_call.1} parent=0
    _
  %s5 = ssub.s32 1, %s3
  %s6 = scalar_select 0, %s5, %s3
  $region1: #{tpu_custom_call.1} parent=0
    #allocation2 [shape = 'u8[512]{0}', space=vmem, size = 0x400, scoped, tag = 'output window, operand 0, single buffered']
    #allocation3 [shape = 's32[1]{0}', space=sflag, size = 0x4, scoped, tag = 'scoped memory for tpu_custom_call.1']
    %7 = vsyncpa [#allocation3], 0
    // Predicated region
    $region2: #{tpu_custom_call.1} parent=1 // pred_check
      _
    $region3: #{tpu_custom_call.1} parent=1 // pred_check_branch
      %9 = sbr.rel (0) target = $region5
    $region4: #{tpu_custom_call.1} parent=1 // pred_region
      _
    $region5: #{tpu_custom_call.1} parent=1 // pred_fallthru
      _
    // Predicated region
    $region6: #{tpu_custom_call.1} parent=1 // pred_check
      _
    $region7: #{tpu_custom_call.1} parent=1 // pred_check_branch
      %11 = sbr.rel (0) target = $region9
    $region8: #{tpu_custom_call.1} parent=1 // pred_region
      _
    $region9: #{tpu_custom_call.1} parent=1 // pred_fallthru
      _
    %p12 = scmp.eq.s32.totalorder 0, 0
    // Predicated region
    $region10: #{tpu_custom_call.1} parent=1 // pred_check
      %p13 = pneg %p12
    $region11: #{tpu_custom_call.1} parent=1 // pred_check_branch
      %15 = sbr.rel (%p13) target = $region13
    $region12: #{tpu_custom_call.1} parent=1 // pred_region
      %vm16 = vcmask 0
      %17 = vst.msk [vmem:[#allocation2] sm:$0x1] %vm16, 0.0
    $region13: #{tpu_custom_call.1} parent=1 // pred_fallthru
      _
    %v18 = vld [vmem:[%s0] sm:$0xff]
    %vm19 = vcmask 261120
    %v20 = vsel %vm19, %v18, -inf
    %21 = vmax.xlane.f32.xlu0 %v20
    %v22 = vpop.xlane.xlu0 %21
    %v23 = vsub.f32 %v18, %v22
    %v24 = vmul.f32 %v23, 1.442695
    %v25 = vpow.pop %v24
    %v26 = vsel %vm19, %v25, 0.0
    %27 = vadd.xlane.f32.xlu0 %v26
    %v28 = vpop.xlane.xlu0 %27
    %v29 = vlog2.pop %v28
    %v30 = vmul.f32 %v29, 0.6931472
    %v31 = vadd.f32 %v30, %v22
    %v32 = vlaneseq
    %v33 = vand.u32 %v32, 127
    %v34 = vld [vmem:[%s1] sm:$0xff]
    %35 = vset.pattern.permute.xlu0 0
    %36 = vperm.xlu0 %35, %v34
    %v37 = vpop.permute.xlu0 %36
    %vm38 = vcmp.eq.s32.totalorder %v33, %v37
    %v39 = vsel %vm38, 0.9, 0.0032258064
    %v40 = vmul.f32 %v39, %v18
    %v41 = vsel %vm19, %v40, 0.0
    %42 = vadd.xlane.f32.xlu0 %v41
    %v43 = vpop.xlane.xlu0 %42
    %v44 = vsub.f32 %v31, %v43
    %v45 = vlaneseq
    %v46 = vshrl.u32 %v45, 7
    %s47 = smul.u32 0, 8
    %v48 = vstv %s47
    %v49 = vadd.s32 %v46, %v48
    %vm50 = vcmp.lt.s32.totalorder %v49, 8
    %v51 = vsel %vm50, %v44, 0.0
    %v52 = vld [vmem:[#allocation2] sm:$0x1]
    %vm53 = vcmask 7168
    %v54 = vsel %vm53, %v51, 0.0
    %55 = vadd.xlane.f32.xlu0 %v54
    %v56 = vpop.xlane.xlu0 %55
    %v57 = vrot.slane %v56, 4
    %v58 = vadd.f32 %v56, %v57
    %v59 = vrot.slane %v58, 2
    %v60 = vadd.f32 %v58, %v59
    %v61 = vrot.slane %v60, 1
    %v62 = vadd.f32 %v60, %v61
    %s63 = vtos %v62
    %v64 = vstv %s63
    %v65 = vadd.f32 %v52, %v64
    %vm66 = vcmask 0
    %67 = vst.msk [vmem:[#allocation2] sm:$0x1] %vm66, %v65
    // Predicated region
    $region14: #{tpu_custom_call.1} parent=1 // pred_check
      _
    $region15: #{tpu_custom_call.1} parent=1 // pred_check_branch
      %69 = sbr.rel (0) target = $region17
    $region16: #{tpu_custom_call.1} parent=1 // pred_region
      %s71 = ssub.s32 16, 16
      %72 = vsyncadd [#allocation3], %s71
      %s74 = sshll.u32 [#allocation2], 4
      %s75 = int_to_ptr.vmem [resolvable:$true] %s74
      %77 = dma.vmem_to_hbm [thread:$0]  %s75, 16, %s2, [#allocation3]
    $region17: #{tpu_custom_call.1} parent=1 // pred_fallthru
      _
    // Predicated region
    $region18: #{tpu_custom_call.1} parent=1 // pred_check
      _
    $region19: #{tpu_custom_call.1} parent=1 // pred_check_branch
      %79 = sbr.rel (0) target = $region21
    $region20: #{tpu_custom_call.1} parent=1 // pred_region
      %80 = dma.done [#allocation3], 16
    $region21: #{tpu_custom_call.1} parent=1 // pred_fallthru
      _
    %81 = vsyncpa [#allocation3], 1

</llo_original>
